<compile_context>
chip_gen: v6e
topology: v6e:2x2x1
jax: 0.10.0
libtpu: 0.0.40
codegen_flags: <defaults>
</compile_context>

<pallas_src>
import functools

import jax
import jax.numpy as jnp
from jax.experimental import pallas as pl
from jax.experimental.pallas import tpu as pltpu


def _round_up(x, m):
    return ((x + m - 1) // m) * m


def _subpixel_geometry(K, stride, p):
    """Tap-window geometry for the stride-subpixel decomposition of ConvTranspose.

    For output row oh = m*stride + r, tap kh contributes input row ih = m + d with
    d = (r + p - kh)/stride when that division is exact.  Returns the union window
    of offsets d over all phases (the kernel slides a T-wide window over the input).
    """
    ds = []
    for r in range(stride):
        for kh in range(K):
            if (r + p - kh) % stride == 0:
                ds.append((r + p - kh) // stride)
    d_min, d_max = min(ds), max(ds)
    T = d_max - d_min + 1
    pad_lo = max(0, -d_min)          # zero-padding before the first input row/col
    pad_hi = max(0, d_max)           # zero-padding after the last input row/col
    base = max(0, d_min)             # first padded row/col the kernel touches
    return d_min, T, pad_lo, pad_hi, base


def _decoder_kernel(x_ref, w_ref, o_ref, *, H, W, Wp, Cin, T, base, Cout,
                    stride, eps, neg_slope):
    # x_ref: (Cin, Sp)            bf16  -- padded input, channels on sublanes,
    #                                      flattened (h, w) spatial on lanes
    # w_ref: (s*s*Cout, T*T*Cin)  bf16  -- subpixel-stacked ConvTranspose weights
    # o_ref: (s*s*Cout, H*Wp)     f32   -- conv + InstanceNorm + LeakyReLU,
    #                                      (phase, channel) rows, spatial lanes
    s = stride
    HWp = H * Wp
    P = s * s * Cout

    # Fused-contraction LHS: stack the T*T shifted spatial windows along the
    # contraction (sublane) axis.  Each tap is a pure lane-offset slice of x_ref
    # (no reshape / relayout); contraction depth becomes T*T*Cin.
    taps = []
    for th in range(T):
        for tw in range(T):
            off = (base + th) * Wp + (base + tw)
            taps.append(x_ref[:, off:off + HWp])               # (Cin, H*Wp) bf16
    lhs = jnp.concatenate(taps, axis=0)                        # (T*T*Cin, H*Wp)

    # Single MXU matmul, f32 accumulation.  Weights on the LHS => the result is
    # already channel/phase-major with spatial lane-dense; no transpose needed.
    r = jnp.dot(w_ref[...], lhs, preferred_element_type=jnp.float32)  # (P, H*Wp)

    # Single-pass InstanceNorm statistics.  Columns whose w-index is in the halo
    # (n >= W) are garbage and are masked out of the sums.
    if Wp > W:
        col = jax.lax.broadcasted_iota(jnp.int32, (1, HWp), 1)
        rm = jnp.where((col % Wp) < W, r, 0.0)
    else:
        rm = r
    row_sum = jnp.sum(rm, axis=1, keepdims=True)               # (P, 1)
    row_sq = jnp.sum(rm * rm, axis=1, keepdims=True)           # (P, 1)
    ch_sum = row_sum[0:Cout, :]
    ch_sq = row_sq[0:Cout, :]
    for i in range(1, s * s):                                  # fold the s*s phases
        ch_sum = ch_sum + row_sum[i * Cout:(i + 1) * Cout, :]
        ch_sq = ch_sq + row_sq[i * Cout:(i + 1) * Cout, :]
    inv_n = 1.0 / float(s * s * H * W)
    mean = ch_sum * inv_n                                      # (Cout, 1)
    var = ch_sq * inv_n - mean * mean                          # biased variance
    scale = jax.lax.rsqrt(var + eps)                           # (Cout, 1)
    shift = mean * scale
    scale_rows = jnp.concatenate([scale] * (s * s), axis=0)    # (P, 1) phase-major
    shift_rows = jnp.concatenate([shift] * (s * s), axis=0)

    y = r * scale_rows - shift_rows                            # normalized, f32
    o_ref[...] = jnp.maximum(y, neg_slope * y).astype(o_ref.dtype)   # LeakyReLU


def decoder_forward(x, skip, weight, bias=None, *, stride=2, eps=1e-5,
                    neg_slope=0.01):
    """Decoder.forward.

    x:      (N, Cx, H, W)
    skip:   (N, Cs, H, W)
    weight: (Cin, Cout, K, K)   -- PyTorch ConvTranspose2d weight layout, Cin=Cx+Cs
    bias:   (Cout,)             -- accepted for API parity; mathematically cancelled
                                   by the following InstanceNorm, so unused.
    """
    xc = jnp.concatenate([x, skip], axis=1)                    # channel concat
    N, Cin, H, W = xc.shape
    assert weight.shape[0] == Cin
    Cout, K = weight.shape[1], weight.shape[2]
    s = stride
    p = (K - s + 1) // 2                                       # get_padding(k, s)
    # output_padding = 2p + s - K  =>  Hout == H*s, Wout == W*s exactly.
    Hout, Wout = H * s, W * s

    d_min, T, pad_lo, pad_hi, base = _subpixel_geometry(K, s, p)
    Hp, Wp = H + pad_lo + pad_hi, W + pad_lo + pad_hi
    HWp = H * Wp
    # Flat spatial extent the kernel addresses (end of the last tap's window),
    # rounded up to full 128-lane tiles for dense DMA.
    sp_needed = (base + T - 1) * (Wp + 1) + HWp
    Sp = _round_up(max(sp_needed, Hp * Wp), 128)

    # Glue: stay channel-first (no input transpose), zero-pad the halo, flatten the
    # spatial dims onto the lane axis, cast MXU operands to bf16.
    x_pad = jnp.pad(xc, ((0, 0), (0, 0), (pad_lo, pad_hi), (pad_lo, pad_hi)))
    x_flat = x_pad.reshape(N, Cin, Hp * Wp)
    x_flat = jnp.pad(x_flat, ((0, 0), (0, 0), (0, Sp - Hp * Wp)))
    x_flat = x_flat.astype(jnp.bfloat16)

    # Subpixel-stacked weights: rows ordered (rh, rw, cout), cols (th, tw, cin).
    # Row (rh, rw, co), col (th, tw, ci) <- W[ci, co, kh, kw] with
    # kh = rh + p - s*(d_min + th) (zero where the tap falls outside [0, K)).
    w_stack = jnp.zeros((s, s, Cout, T, T, Cin), weight.dtype)
    for rh in range(s):
        for th in range(T):
            kh = rh + p - s * (d_min + th)
            if not 0 <= kh < K:
                continue
            for rw in range(s):
                for tw in range(T):
                    kw = rw + p - s * (d_min + tw)
                    if not 0 <= kw < K:
                        continue
                    w_stack = w_stack.at[rh, rw, :, th, tw, :].set(
                        weight[:, :, kh, kw].T)
    w_mat = w_stack.reshape(s * s * Cout, T * T * Cin).astype(jnp.bfloat16)

    # NOTE: `bias` is intentionally NOT used -- InstanceNorm(affine=False) subtracts
    # the per-channel spatial mean, which cancels a per-channel constant exactly.

    P = s * s * Cout
    kernel = functools.partial(_decoder_kernel, H=H, W=W, Wp=Wp, Cin=Cin, T=T,
                               base=base, Cout=Cout, stride=s, eps=eps,
                               neg_slope=neg_slope)
    out = pl.pallas_call(
        kernel,
        out_shape=jax.ShapeDtypeStruct((N, P, HWp), x.dtype),
        grid=(N,),
        in_specs=[
            pl.BlockSpec((None, Cin, Sp), lambda n: (n, 0, 0)),   # per-batch image
            pl.BlockSpec((P, T * T * Cin), lambda n: (0, 0)),     # shared weights
        ],
        out_specs=pl.BlockSpec((None, P, HWp), lambda n: (n, 0, 0)),
        compiler_params=pltpu.CompilerParams(
            dimension_semantics=("parallel",),
            vmem_limit_bytes=48 * 1024 * 1024),                   # fits v7x 64 MiB
    )(x_flat, w_mat)

    # (N, s, s, Cout, H, Wp): drop the halo columns, interleave the s*s phases.
    out = out.reshape(N, s, s, Cout, H, Wp)[:, :, :, :, :, :W]
    out = jnp.transpose(out, (0, 3, 4, 1, 5, 2)).reshape(N, Cout, Hout, Wout)
    return out


def decoder_reference(x, skip, weight, bias, *, stride, eps=1e-5, neg_slope=0.01):
    """Pure-JAX f32 reference matching the PyTorch Decoder forward (incl. bias)."""
    xc = jnp.concatenate([x, skip], axis=1)
    K = weight.shape[-1]
    p = (K - stride + 1) // 2
    op = 2 * p + stride - K
    # ConvTranspose2d == lhs-dilated cross-correlation with the flipped/swapped kernel.
    w_eq = jnp.transpose(jnp.flip(weight, axis=(2, 3)), (1, 0, 2, 3))   # (Cout,Cin,K,K)
    y = jax.lax.conv_general_dilated(
        xc, w_eq, window_strides=(1, 1),
        padding=[(K - 1 - p, K - 1 - p + op)] * 2,
        lhs_dilation=(stride, stride),
        dimension_numbers=("NCHW", "OIHW", "NCHW"))
    y = y + bias.reshape(1, -1, 1, 1)
    mean = y.mean(axis=(2, 3), keepdims=True)
    var = ((y - mean) ** 2).mean(axis=(2, 3), keepdims=True)
    y = (y - mean) * jax.lax.rsqrt(var + eps)
    return jnp.where(y >= 0, y, neg_slope * y)


if __name__ == "__main__":
    # Decoder(spatial_dims=2, in_channels=8, out_channels=8, kernel_size=3, stride=2,
    #         norm_name="instance",
    #         act_name=("leakyrelu", {"inplace": True, "negative_slope": 0.01}))
    # forward(x, skip) with x:(2,4,16,16), skip:(2,4,16,16) -> concat Cin=8 -> (2,8,32,32)
    N, Cx, Cs, H, W = 2, 4, 4, 16, 16
    Cout, K, stride = 8, 3, 2
    Cin = Cx + Cs

    key = jax.random.PRNGKey(0)
    kx, ks, kw, kb = jax.random.split(key, 4)
    x = jax.random.normal(kx, (N, Cx, H, W), dtype=jnp.float32)
    skip = jax.random.normal(ks, (N, Cs, H, W), dtype=jnp.float32)
    # ConvTranspose2d weight layout: (in_channels, out_channels, K, K)
    weight = jax.random.normal(kw, (Cin, Cout, K, K), dtype=jnp.float32) * 0.1
    bias = jax.random.normal(kb, (Cout,), dtype=jnp.float32) * 0.05

    out = decoder_forward(x, skip, weight, bias, stride=stride)
    out = jax.block_until_ready(out)

    ref = decoder_reference(x, skip, weight, bias, stride=stride)
    assert out.shape == ref.shape == (N, Cout, H * stride, W * stride), out.shape
    # bf16 MXU operands (f32 accumulation/stats) -> looser tolerance than pure f32.
    assert jnp.allclose(out, ref, atol=5e-2, rtol=5e-2), float(
        jnp.max(jnp.abs(out - ref)))

    print("KERNEL_OK")
</pallas_src>

<mosaic_0001>
module attributes {stable_mosaic.version = 11 : i64} {
  func.func @_decoder_kernel(%arg0: i32, %arg1: memref<1x8x384xbf16, #tpu.memory_space<vmem>>, %arg2: memref<32x32xbf16, #tpu.memory_space<vmem>>, %arg3: memref<1x32x272xf32, #tpu.memory_space<vmem>>) attributes {dimension_semantics = [#tpu.dimension_semantics<parallel>], iteration_bounds = array<i64: 2>, scalar_prefetch = 0 : i64, scratch_operands = 0 : i64, tpu.core_type = #tpu.core_type<tc>, window_params = [{transform_indices = @transform_0, window_bounds = array<i64: 1, 8, 384>}, {pipeline_mode = #tpu.pipeline_mode<synchronous>, transform_indices = @transform_1, window_bounds = array<i64: 32, 32>}, {transform_indices = @transform_2, window_bounds = array<i64: 1, 32, 272>}]} {
    %c0 = arith.constant 0 : index
    %c0_0 = arith.constant 0 : index
    %c0_1 = arith.constant 0 : index
    %0 = vector.load %arg1[%c0, %c0_0, %c0_1] : memref<1x8x384xbf16, #tpu.memory_space<vmem>>, vector<1x8x272xbf16>
    %1 = vector.shape_cast %0 : vector<1x8x272xbf16> to vector<8x272xbf16>
    %c0_2 = arith.constant 0 : index
    %c0_3 = arith.constant 0 : index
    %c1 = arith.constant 1 : index
    %2 = vector.load %arg1[%c0_2, %c0_3, %c1] : memref<1x8x384xbf16, #tpu.memory_space<vmem>>, vector<1x8x272xbf16>
    %3 = vector.shape_cast %2 : vector<1x8x272xbf16> to vector<8x272xbf16>
    %c0_4 = arith.constant 0 : index
    %c0_5 = arith.constant 0 : index
    %c17 = arith.constant 17 : index
    %4 = vector.load %arg1[%c0_4, %c0_5, %c17] : memref<1x8x384xbf16, #tpu.memory_space<vmem>>, vector<1x8x272xbf16>
    %5 = vector.shape_cast %4 : vector<1x8x272xbf16> to vector<8x272xbf16>
    %c0_6 = arith.constant 0 : index
    %c0_7 = arith.constant 0 : index
    %c18 = arith.constant 18 : index
    %6 = vector.load %arg1[%c0_6, %c0_7, %c18] : memref<1x8x384xbf16, #tpu.memory_space<vmem>>, vector<1x8x272xbf16>
    %7 = vector.shape_cast %6 : vector<1x8x272xbf16> to vector<8x272xbf16>
    %8 = tpu.concatenate %1, %3, %5, %7 in 0 : vector<8x272xbf16>, vector<8x272xbf16>, vector<8x272xbf16>, vector<8x272xbf16> -> vector<32x272xbf16>
    %c0_8 = arith.constant 0 : index
    %c0_9 = arith.constant 0 : index
    %9 = vector.load %arg2[%c0_8, %c0_9] : memref<32x32xbf16, #tpu.memory_space<vmem>>, vector<32x32xbf16>
    %cst = arith.constant dense<0.000000e+00> : vector<32x272xf32>
    %10 = tpu.matmul %9, %8, %cst {dimension_numbers = #tpu.dot_dimension_numbers<[1], [0], [0], [1], [0, 0, 1, 1], [], []>} : vector<32x32xbf16>, vector<32x272xbf16>, vector<32x272xf32> -> vector<32x272xf32>
    %11 = tpu.iota {dimensions = array<i32: 1>} : vector<1x272xi32>
    %c17_i32 = arith.constant 17 : i32
    %c0_i32 = arith.constant 0 : i32
    %12 = arith.cmpi eq, %c17_i32, %c0_i32 : i32
    %c1_i32 = arith.constant 1 : i32
    %13 = arith.select %12, %c1_i32, %c17_i32 : i32
    %14 = vector.broadcast %13 : i32 to vector<1x272xi32>
    %15 = arith.remsi %11, %14 : vector<1x272xi32>
    %c0_i32_10 = arith.constant 0 : i32
    %16 = vector.broadcast %c0_i32_10 : i32 to vector<1x272xi32>
    %17 = arith.cmpi ne, %15, %16 : vector<1x272xi32>
    %c0_i32_11 = arith.constant 0 : i32
    %18 = vector.broadcast %c0_i32_11 : i32 to vector<1x272xi32>
    %19 = arith.cmpi slt, %15, %18 : vector<1x272xi32>
    %c0_i32_12 = arith.constant 0 : i32
    %20 = arith.cmpi slt, %13, %c0_i32_12 : i32
    %21 = vector.broadcast %20 : i1 to vector<1x272xi1>
    %22 = vector.broadcast %21 : vector<1x272xi1> to vector<1x272xi1>
    %23 = arith.xori %19, %22 : vector<1x272xi1>
    %24 = arith.andi %23, %17 : vector<1x272xi1>
    %25 = vector.broadcast %13 : i32 to vector<1x272xi32>
    %26 = arith.addi %15, %25 : vector<1x272xi32>
    %27 = arith.select %24, %26, %15 : vector<1x272xi1>, vector<1x272xi32>
    %c16_i32 = arith.constant 16 : i32
    %28 = vector.broadcast %c16_i32 : i32 to vector<1x272xi32>
    %29 = arith.cmpi slt, %27, %28 : vector<1x272xi32>
    %cst_13 = arith.constant 0.000000e+00 : f32
    %30 = vector.shape_cast %29 : vector<1x272xi1> to vector<1x272xi1>
    %31 = vector.broadcast %30 : vector<1x272xi1> to vector<32x272xi1>
    %32 = vector.broadcast %cst_13 : f32 to vector<32x272xf32>
    %33 = arith.select %31, %10, %32 : vector<32x272xi1>, vector<32x272xf32>
    %cst_14 = arith.constant dense<0.000000e+00> : vector<32xf32>
    %34 = vector.multi_reduction <add>, %33, %cst_14 [1] : vector<32x272xf32> to vector<32xf32>
    %35 = vector.shape_cast %34 : vector<32xf32> to vector<32x1xf32>
    %36 = arith.mulf %33, %33 : vector<32x272xf32>
    %cst_15 = arith.constant dense<0.000000e+00> : vector<32xf32>
    %37 = vector.multi_reduction <add>, %36, %cst_15 [1] : vector<32x272xf32> to vector<32xf32>
    %38 = vector.shape_cast %37 : vector<32xf32> to vector<32x1xf32>
    %39 = vector.extract_strided_slice %35 {offsets = [0, 0], sizes = [8, 1], strides = [1, 1]} : vector<32x1xf32> to vector<8x1xf32>
    %40 = vector.extract_strided_slice %38 {offsets = [0, 0], sizes = [8, 1], strides = [1, 1]} : vector<32x1xf32> to vector<8x1xf32>
    %41 = vector.extract_strided_slice %35 {offsets = [8, 0], sizes = [8, 1], strides = [1, 1]} : vector<32x1xf32> to vector<8x1xf32>
    %42 = arith.addf %39, %41 : vector<8x1xf32>
    %43 = vector.extract_strided_slice %38 {offsets = [8, 0], sizes = [8, 1], strides = [1, 1]} : vector<32x1xf32> to vector<8x1xf32>
    %44 = arith.addf %40, %43 : vector<8x1xf32>
    %45 = vector.extract_strided_slice %35 {offsets = [16, 0], sizes = [8, 1], strides = [1, 1]} : vector<32x1xf32> to vector<8x1xf32>
    %46 = arith.addf %42, %45 : vector<8x1xf32>
    %47 = vector.extract_strided_slice %38 {offsets = [16, 0], sizes = [8, 1], strides = [1, 1]} : vector<32x1xf32> to vector<8x1xf32>
    %48 = arith.addf %44, %47 : vector<8x1xf32>
    %49 = vector.extract_strided_slice %35 {offsets = [24, 0], sizes = [8, 1], strides = [1, 1]} : vector<32x1xf32> to vector<8x1xf32>
    %50 = arith.addf %46, %49 : vector<8x1xf32>
    %51 = vector.extract_strided_slice %38 {offsets = [24, 0], sizes = [8, 1], strides = [1, 1]} : vector<32x1xf32> to vector<8x1xf32>
    %52 = arith.addf %48, %51 : vector<8x1xf32>
    %cst_16 = arith.constant 9.765625E-4 : f32
    %53 = vector.broadcast %cst_16 : f32 to vector<8x1xf32>
    %54 = arith.mulf %50, %53 : vector<8x1xf32>
    %cst_17 = arith.constant 9.765625E-4 : f32
    %55 = vector.broadcast %cst_17 : f32 to vector<8x1xf32>
    %56 = arith.mulf %52, %55 : vector<8x1xf32>
    %57 = arith.mulf %54, %54 : vector<8x1xf32>
    %58 = arith.subf %56, %57 : vector<8x1xf32>
    %cst_18 = arith.constant 9.99999974E-6 : f32
    %59 = vector.broadcast %cst_18 : f32 to vector<8x1xf32>
    %60 = arith.addf %58, %59 : vector<8x1xf32>
    %61 = math.rsqrt %60 : vector<8x1xf32>
    %62 = arith.mulf %54, %61 : vector<8x1xf32>
    %63 = tpu.concatenate %61, %61, %61, %61 in 0 : vector<8x1xf32>, vector<8x1xf32>, vector<8x1xf32>, vector<8x1xf32> -> vector<32x1xf32>
    %64 = tpu.concatenate %62, %62, %62, %62 in 0 : vector<8x1xf32>, vector<8x1xf32>, vector<8x1xf32>, vector<8x1xf32> -> vector<32x1xf32>
    %65 = vector.broadcast %63 : vector<32x1xf32> to vector<32x272xf32>
    %66 = arith.mulf %10, %65 : vector<32x272xf32>
    %67 = vector.broadcast %64 : vector<32x1xf32> to vector<32x272xf32>
    %68 = arith.subf %66, %67 : vector<32x272xf32>
    %cst_19 = arith.constant 0.00999999977 : f32
    %69 = vector.broadcast %cst_19 : f32 to vector<32x272xf32>
    %70 = arith.mulf %69, %68 : vector<32x272xf32>
    %71 = arith.maximumf %68, %70 : vector<32x272xf32>
    %c0_20 = arith.constant 0 : index
    %c0_21 = arith.constant 0 : index
    %c0_22 = arith.constant 0 : index
    %72 = vector.load %arg3[%c0_20, %c0_21, %c0_22] : memref<1x32x272xf32, #tpu.memory_space<vmem>>, vector<1x32x272xf32>
    %73 = vector.shape_cast %72 : vector<1x32x272xf32> to vector<32x272xf32>
    %74 = vector.shape_cast %71 : vector<32x272xf32> to vector<1x32x272xf32>
    tpu.vector_store %arg3[%c0_20, %c0_21, %c0_22], %74 {strides = array<i32>} : memref<1x32x272xf32, #tpu.memory_space<vmem>>, vector<1x32x272xf32>,
    return
  }
  func.func @transform_0(%arg0: i32) -> (i32, i32, i32) {
    %c0_i32 = arith.constant 0 : i32
    %c0_i32_0 = arith.constant 0 : i32
    %c0_i32_1 = arith.constant 0 : i32
    return %arg0, %c0_i32, %c0_i32_0 : i32, i32, i32
  }
  func.func @transform_1(%arg0: i32) -> (i32, i32) {
    %c0_i32 = arith.constant 0 : i32
    %c0_i32_0 = arith.constant 0 : i32
    %c0_i32_1 = arith.constant 0 : i32
    return %c0_i32, %c0_i32_0 : i32, i32
  }
  func.func @transform_2(%arg0: i32) -> (i32, i32, i32) {
    %c0_i32 = arith.constant 0 : i32
    %c0_i32_0 = arith.constant 0 : i32
    %c0_i32_1 = arith.constant 0 : i32
    return %arg0, %c0_i32, %c0_i32_0 : i32, i32, i32
  }
}

</mosaic_0001>

<llo_original>
// kernel: tpu_custom_call.1
$region0: #{tpu_custom_call.1}
  #allocation0 [shape = 'u32[]', space=smem, size = 0x4, offset = 0x4, fixed_abs, tag = 'smem constant byte address 0x4 - core index']
  #allocation1 [shape = 'u32[144,128]{1,0:T(1,128)}', space=vmem, size = 0x12000, scoped, tag = 'internal scratch']
  %s0 = inlined_call_operand.hbm [shape: bf16[2,8,384], index: 0, kind: input, shape index: {}]
  %s1 = inlined_call_operand.hbm [shape: bf16[32,32], index: 1, kind: input, shape index: {}]
  %s2 = inlined_call_operand.hbm [shape: f32[2,32,272], index: 2, kind: output, shape index: {}]
  %s3 = sld [smem:[#allocation0]]
  $region49: #{tpu_custom_call.1} parent=0
    _
  %s5 = ssub.s32 1, %s3
  %s6 = scalar_select 0, %s5, %s3
  $region1: #{tpu_custom_call.1} parent=0
    #allocation2 [shape = 'u8[12288]{0}', space=vmem, size = 0x3000, scoped, tag = 'input window, operand 0']
    #allocation3 [shape = 's32[2]{0}', space=sflag, size = 0x8, scoped, tag = 'scoped memory for tpu_custom_call.1']
    #allocation4 [shape = 's32[2]{0}', space=sflag, size = 0x8, scoped, tag = 'scoped memory for tpu_custom_call.1']
    #allocation5 [shape = 'u8[8192]{0}', space=vmem, size = 0x2000, scoped, tag = 'input window, operand 1, single buffered']
    #allocation6 [shape = 's32[1]{0}', space=sflag, size = 0x4, scoped, tag = 'scoped memory for tpu_custom_call.1']
    #allocation7 [shape = 'u8[98304]{0}', space=vmem, size = 0x18000, scoped, tag = 'output window, operand 0']
    %7 = vsyncpa [#allocation3], 0
    %s8 = scalar_lea.sflag [#allocation3], 1
    %9 = vsyncpa %s8, 0
    %10 = vsyncpa [#allocation6], 0
    %11 = vsyncpa [#allocation4], 0
    %s12 = scalar_lea.sflag [#allocation4], 1
    %13 = vsyncpa %s12, 0
    loop: start=0, step=1, limit=4
    $region2: #{tpu_custom_call.1} parent=1 // loop_pre_header
      _
    $region3: #{tpu_custom_call.1} parent=1 // loop_header
      %s15 = sphi 0, %s19
      %p16 = scmp.ge.s32.totalorder %s15, 4
      %s25 = sphi 0, %s27
      %s28 = sphi 0, %s25
      %s29 = sphi 0, %s28
      %s45 = sphi 0, %s29
      %s49 = sphi 0, %s49
      %s51 = sphi 0, %s49
      %s52 = sphi 0, %s51
      %s66 = sphi 0, %s52
      %s72 = sphi 0, %s74
      %s75 = sphi 0, %s72
      %s76 = sphi 0, %s75
      %s92 = sphi 0, %s76
    $region4: #{tpu_custom_call.1} parent=1 // loop_header_branch
      %18 = sbr.rel (%p16) target = $region8
    $region5: #{tpu_custom_call.1} parent=1 // loop_body
      %s20 = ssub.s32 %s15, 1
      %s21 = ssub.s32 %s15, 2
      %s22 = sadd.s32 %s15, 1
      %s23 = ssub.s32 %s15, %s22
      %p24 = scmp.eq.s32.totalorder %s23, 0
      %s26 = sadd.s32 %s25, 1
      %s27 = scalar_select %p24, %s25, %s26
      %p30 = pneg %p24
      %p31 = scmp.eq.s32.totalorder %s15, 1
      %p32 = por %p30, %p31
      %p33 = scmp.ne.s32.totalorder %s25, %s28
      %p34 = scmp.eq.s32.totalorder %s15, 0
      %p35 = por %p33, %p34
      %p36 = scmp.ne.s32.totalorder %s25, %s28
      %p37 = scmp.eq.s32.totalorder %s20, 1
      %p38 = por %p36, %p37
      %p39 = scmp.ne.s32.totalorder %s28, %s29
      %p40 = scmp.eq.s32.totalorder %s20, 0
      %p41 = por %p39, %p40
      %p42 = scmp.ne.s32.totalorder %s28, %s29
      %p43 = scmp.eq.s32.totalorder %s21, 1
      %p44 = por %p42, %p43
      %p46 = scmp.ne.s32.totalorder %s29, %s45
      %p47 = scmp.eq.s32.totalorder %s21, 0
      %p48 = por %p46, %p47
      %s50 = sadd.s32 %s49, 1
      %p53 = scmp.eq.s32.totalorder %s15, 1
      %p54 = scmp.ne.s32.totalorder %s49, %s51
      %p55 = scmp.eq.s32.totalorder %s15, 0
      %p56 = por %p54, %p55
      %p57 = scmp.ne.s32.totalorder %s49, %s51
      %p58 = scmp.eq.s32.totalorder %s20, 1
      %p59 = por %p57, %p58
      %p60 = scmp.ne.s32.totalorder %s51, %s52
      %p61 = scmp.eq.s32.totalorder %s20, 0
      %p62 = por %p60, %p61
      %p63 = scmp.ne.s32.totalorder %s51, %s52
      %p64 = scmp.eq.s32.totalorder %s21, 1
      %p65 = por %p63, %p64
      %p67 = scmp.ne.s32.totalorder %s52, %s66
      %p68 = scmp.eq.s32.totalorder %s21, 0
      %p69 = por %p67, %p68
      %s70 = ssub.s32 %s15, %s22
      %p71 = scmp.eq.s32.totalorder %s70, 0
      %s73 = sadd.s32 %s72, 1
      %s74 = scalar_select %p71, %s72, %s73
      %p77 = pneg %p71
      %p78 = scmp.eq.s32.totalorder %s15, 1
      %p79 = por %p77, %p78
      %p80 = scmp.ne.s32.totalorder %s72, %s75
      %p81 = scmp.eq.s32.totalorder %s15, 0
      %p82 = por %p80, %p81
      %p83 = scmp.ne.s32.totalorder %s72, %s75
      %p84 = scmp.eq.s32.totalorder %s20, 1
      %p85 = por %p83, %p84
      %p86 = scmp.ne.s32.totalorder %s75, %s76
      %p87 = scmp.eq.s32.totalorder %s20, 0
      %p88 = por %p86, %p87
      %p89 = scmp.ne.s32.totalorder %s75, %s76
      %p90 = scmp.eq.s32.totalorder %s21, 1
      %p91 = por %p89, %p90
      %p93 = scmp.ne.s32.totalorder %s76, %s92
      %p94 = scmp.eq.s32.totalorder %s21, 0
      %p95 = por %p93, %p94
      %p96 = scmp.le.s32.totalorder 1, %s15
      %p97 = scmp.lt.s32.totalorder %s15, 3
      %p98 = pnand %p96, %p97
      %p99 = pneg %p98
      // Predicated region
      $region9: #{tpu_custom_call.1} parent=5 // pred_check
        _
      $region10: #{tpu_custom_call.1} parent=5 // pred_check_branch
        %101 = sbr.rel (%p98) target = $region12
      $region11: #{tpu_custom_call.1} parent=5 // pred_region
        %s102 = ssub.s32 %s15, 1
        // Predicated region
        $region13: #{tpu_custom_call.1} parent=11 // pred_check
          %p103 = pneg %p62
        $region14: #{tpu_custom_call.1} parent=11 // pred_check_branch
          %105 = sbr.rel (%p103) target = $region16
        $region15: #{tpu_custom_call.1} parent=11 // pred_region
          %s107 = ssub.s32 256, 256
          %108 = vsyncadd [#allocation6], %s107
          %s109 = sshll.u32 [#allocation5], 4
          %s110 = int_to_ptr.vmem [resolvable:$true] %s109
          %115 = dma.hbm_to_vmem [thread:$0]  %s1, 256, %s110, [#allocation6], 64, 64, 4
        $region16: #{tpu_custom_call.1} parent=11 // pred_fallthru
          _
      $region12: #{tpu_custom_call.1} parent=5 // pred_fallthru
        _
      %p116 = scmp.lt.s32.totalorder %s15, 2
      // Predicated region
      $region17: #{tpu_custom_call.1} parent=5 // pred_check
        %p117 = pneg %p116
      $region18: #{tpu_custom_call.1} parent=5 // pred_check_branch
        %119 = sbr.rel (%p117) target = $region20
      $region19: #{tpu_custom_call.1} parent=5 // pred_region
        // Predicated region
        $region21: #{tpu_custom_call.1} parent=19 // pred_check
          %p120 = pneg %p35
        $region22: #{tpu_custom_call.1} parent=19 // pred_check_branch
          %122 = sbr.rel (%p120) target = $region24
        $region23: #{tpu_custom_call.1} parent=19 // pred_region
          %s123 = sand.u32 %s25, 1
          %s124 = scalar_lea.sflag [#allocation3], %s123
          %s125 = sand.u32 %s25, 1
          %s126 = smul.addr %s125, 12
          %s127 = scalar_lea.vmem [#allocation2], %s126
          %s129 = ssub.s32 192, 192
          %130 = vsyncadd %s124, %s129
          %s131 = smul.addr %s15, 3
          %s132 = smul.addr %s131, 64
          %s133 = scalar_lea.hbm %s0, %s132
          %s135 = sshll.u32 %s127, 4
          %s136 = int_to_ptr.vmem [resolvable:$true] %s135
          %138 = dma.hbm_to_vmem [thread:$0]  %s133, 192, %s136, %s124
        $region24: #{tpu_custom_call.1} parent=19 // pred_fallthru
          _
      $region20: #{tpu_custom_call.1} parent=5 // pred_fallthru
        _
      %p139 = scmp.le.s32.totalorder 1, %s15
      %p140 = scmp.lt.s32.totalorder %s15, 3
      %p141 = pnand %p139, %p140
      %p142 = pneg %p141
      // Predicated region
      $region25: #{tpu_custom_call.1} parent=5 // pred_check
        _
      $region26: #{tpu_custom_call.1} parent=5 // pred_check_branch
        %144 = sbr.rel (%p141) target = $region28
      $region27: #{tpu_custom_call.1} parent=5 // pred_region
        %s145 = ssub.s32 %s15, 1
        %s146 = sand.u32 %s28, 1
        %s147 = scalar_lea.sflag [#allocation3], %s146
        %s148 = sand.u32 %s28, 1
        %s149 = smul.addr %s148, 12
        %s150 = scalar_lea.vmem [#allocation2], %s149
        // Predicated region
        $region29: #{tpu_custom_call.1} parent=27 // pred_check
          %p151 = pneg %p41
        $region30: #{tpu_custom_call.1} parent=27 // pred_check_branch
          %153 = sbr.rel (%p151) target = $region32
        $region31: #{tpu_custom_call.1} parent=27 // pred_region
          %154 = dma.done %s147, 192
        $region32: #{tpu_custom_call.1} parent=27 // pred_fallthru
          _
        // Predicated region
        $region33: #{tpu_custom_call.1} parent=27 // pred_check
          %p155 = pneg %p62
        $region34: #{tpu_custom_call.1} parent=27 // pred_check_branch
          %157 = sbr.rel (%p155) target = $region36
        $region35: #{tpu_custom_call.1} parent=27 // pred_region
          %158 = dma.done [#allocation6], 256
        $region36: #{tpu_custom_call.1} parent=27 // pred_fallthru
          _
        %s159 = sand.u32 %s28, 1
        %s160 = scalar_lea.sflag [#allocation3], %s159
        %s161 = sand.u32 %s28, 1
        %s162 = smul.addr %s161, 12
        %s163 = scalar_lea.vmem [#allocation2], %s162
        %p164 = pneg %p41
        %p165 = pneg %p38
        %p166 = pneg %p62
        %p167 = pneg %p59
        %p168 = pneg %p88
        %p169 = pneg %p85
        %s170 = sand.u32 %s75, 1
        %s171 = scalar_lea.sflag [#allocation4], %s170
        %s172 = sand.u32 %s75, 1
        %s173 = smul.addr %s172, 96
        %s174 = scalar_lea.vmem [#allocation7], %s173
        %v176 = vld [vmem:[%s150] sm:$0xff]
        %v177 = vld [vmem:[%s150 + $0x8] sm:$0xf]
        %v180 = vunpack.c.l.b16 %v176
        %v181 = vunpack.c.h.b16 %v176
        %v182 = vunpack.c.l.b16 %v177
        %v183 = vpack.c.b16 %v180, %v180
        %v184 = vpack.c.b16 %v181, %v181
        %v185 = vpack.c.b16 %v182, %v182
        %186 = vrot.lane.b32.xlu0 %v183, 127
        %v187 = vpop.permute.xlu0 %186
        %188 = vrot.lane.b32.xlu0 %v184, 127
        %v189 = vpop.permute.xlu0 %188
        %190 = vrot.lane.b32.xlu0 %v185, 127
        %v191 = vpop.permute.xlu0 %190
        %vm192 = vcmask 1039360
        %v193 = vsel %vm192, %v187, %v189
        %v194 = vsel %vm192, %v189, %v191
        %195 = vrot.lane.b32.xlu0 %v183, 111
        %v196 = vpop.permute.xlu0 %195
        %197 = vrot.lane.b32.xlu0 %v184, 111
        %v198 = vpop.permute.xlu0 %197
        %199 = vrot.lane.b32.xlu0 %v185, 111
        %v200 = vpop.permute.xlu0 %199
        %vm201 = vcmask 908288
        %v202 = vsel %vm201, %v196, %v198
        %v203 = vsel %vm201, %v198, %v200
        %204 = vrot.lane.b32.xlu0 %v183, 110
        %v205 = vpop.permute.xlu0 %204
        %206 = vrot.lane.b32.xlu0 %v184, 110
        %v207 = vpop.permute.xlu0 %206
        %208 = vrot.lane.b32.xlu0 %v185, 110
        %v209 = vpop.permute.xlu0 %208
        %vm210 = vcmask 900096
        %v211 = vsel %vm210, %v205, %v207
        %v212 = vsel %vm210, %v207, %v209
        %vm213 = vcmask 1043456
        %v216 = vsel %vm213, %v183, %v193
        %v220 = vsel %vm213, %v184, %v194
        %v224 = vsel %vm213, %v185, %v191
        %v228 = vsel %vm213, %v202, %v211
        %v232 = vsel %vm213, %v203, %v212
        %v236 = vsel %vm213, %v200, %v209
        %v238 = vld [vmem:[#allocation5] sm:$0xf]
        %v239 = vld [vmem:[#allocation5 + $0x4] sm:$0xf]
        %v240 = vld [vmem:[#allocation5 + $0x8] sm:$0xf]
        %v241 = vld [vmem:[#allocation5 + $0xc] sm:$0xf]
        %v246 = vunpack.c.l.b16 %v238
        %v247 = vunpack.c.l.b16 %v239
        %v248 = vunpack.c.l.b16 %v240
        %v249 = vunpack.c.l.b16 %v241
        %v250 = vpack.c.b16 %v247, %v246
        %v251 = vpack.c.b16 %v249, %v248
        %vm252 = vcmask 261120
        %v254 = vsel %vm252, %v250, 0
        %v257 = vsel %vm252, %v251, 0
        %259 = vmatprep.subr.bf16.mxu0 0
        %260 = vmatpush1.bf16.msra.mxu0 0
        %261 = vmatprep.subr.bf16.mxu0 0
        %262 = vmatpush1.bf16.msra.mxu0 0
        %263 = vmatprep.subr.bf16.mxu0 0
        %264 = vmatpush1.bf16.msra.mxu0 0
        %265 = vmatprep.subr.bf16.mxu0 0
        %266 = vmatpush1.bf16.msra.mxu0 0
        %267 = vmatprep.subr.bf16.mxu0 0
        %268 = vmatpush1.bf16.msra.mxu0 0
        %269 = vmatprep.subr.bf16.mxu0 0
        %270 = vmatpush1.bf16.msra.mxu0 0
        %271 = vmatprep.subr.bf16.mxu0 %v232
        %272 = vmatpush1.bf16.msra.mxu0 %v228
        %273 = vmatprep.subr.bf16.mxu0 %v220
        %274 = vmatpush1.bf16.msra.mxu0 %v216
        %275 = vmatprep.subr.bf16.mxu0 0
        %276 = vmatpush2.bf16.msra.mxu0 0
        %277 = vmatprep.subr.bf16.mxu0 0
        %278 = vmatpush2.bf16.msra.mxu0 0
        %279 = vmatprep.subr.bf16.mxu0 0
        %280 = vmatpush2.bf16.msra.mxu0 0
        %281 = vmatprep.subr.bf16.mxu0 0
        %282 = vmatpush2.bf16.msra.mxu0 0
        %283 = vmatprep.subr.bf16.mxu0 0
        %284 = vmatpush2.bf16.msra.mxu0 0
        %285 = vmatprep.subr.bf16.mxu0 0
        %286 = vmatpush2.bf16.msra.mxu0 0
        %287 = vmatprep.subr.bf16.mxu0 0
        %288 = vmatpush2.bf16.msra.mxu0 0
        %289 = vmatprep.subr.bf16.mxu0 0
        %290 = vmatpush2.bf16.msra.mxu0 0
        %291 = vmatprep.mubr.bf16.mxu0 0
        %292 = vmatmul.mubr.bf16.gmra.mxu0 %v254
        %v293 = vpop.f32.mrf.mxu0
        %v294 = vadd.f32 0.0, %v293
        %v295 = vpop.f32.mrf.mxu0
        %v296 = vadd.f32 0.0, %v295
        %v297 = vpop.f32.mrf.mxu0
        %v298 = vadd.f32 0.0, %v297
        %v299 = vpop.f32.mrf.mxu0
        %v300 = vadd.f32 0.0, %v299
        %301 = vmatprep.mubr.bf16.mxu0 0
        %302 = vmatmul.mubr.bf16.gmra.mxu0 %v257
        %v303 = vpop.f32.mrf.mxu0
        %v304 = vadd.f32 0.0, %v303
        %v305 = vpop.f32.mrf.mxu0
        %v306 = vadd.f32 0.0, %v305
        %v307 = vpop.f32.mrf.mxu0
        %v308 = vadd.f32 0.0, %v307
        %v309 = vpop.f32.mrf.mxu0
        %v310 = vadd.f32 0.0, %v309
        %311 = vdwg.mxu0
        %312 = vmatprep.subr.bf16.mxu0 0
        %313 = vmatpush1.bf16.msra.mxu0 0
        %314 = vmatprep.subr.bf16.mxu0 0
        %315 = vmatpush1.bf16.msra.mxu0 0
        %316 = vmatprep.subr.bf16.mxu0 0
        %317 = vmatpush1.bf16.msra.mxu0 0
        %318 = vmatprep.subr.bf16.mxu0 0
        %319 = vmatpush1.bf16.msra.mxu0 0
        %320 = vmatprep.subr.bf16.mxu0 0
        %321 = vmatpush1.bf16.msra.mxu0 0
        %322 = vmatprep.subr.bf16.mxu0 0
        %323 = vmatpush1.bf16.msra.mxu0 0
        %324 = vmatprep.subr.bf16.mxu0 0
        %325 = vmatpush1.bf16.msra.mxu0 %v236
        %326 = vmatprep.subr.bf16.mxu0 0
        %327 = vmatpush1.bf16.msra.mxu0 %v224
        %328 = vmatprep.subr.bf16.mxu0 0
        %329 = vmatpush2.bf16.msra.mxu0 0
        %330 = vmatprep.subr.bf16.mxu0 0
        %331 = vmatpush2.bf16.msra.mxu0 0
        %332 = vmatprep.subr.bf16.mxu0 0
        %333 = vmatpush2.bf16.msra.mxu0 0
        %334 = vmatprep.subr.bf16.mxu0 0
        %335 = vmatpush2.bf16.msra.mxu0 0
        %336 = vmatprep.subr.bf16.mxu0 0
        %337 = vmatpush2.bf16.msra.mxu0 0
        %338 = vmatprep.subr.bf16.mxu0 0
        %339 = vmatpush2.bf16.msra.mxu0 0
        %340 = vmatprep.subr.bf16.mxu0 0
        %341 = vmatpush2.bf16.msra.mxu0 0
        %342 = vmatprep.subr.bf16.mxu0 0
        %343 = vmatpush2.bf16.msra.mxu0 0
        %344 = vmatprep.mubr.bf16.mxu0 0
        %345 = vmatmul.mubr.bf16.gmra.mxu0 %v254
        %v346 = vpop.f32.mrf.mxu0
        %v347 = vadd.f32 0.0, %v346
        %v348 = vpop.f32.mrf.mxu0
        %v349 = vpop.f32.mrf.mxu0
        %v350 = vadd.f32 0.0, %v349
        %v351 = vpop.f32.mrf.mxu0
        %352 = vmatprep.mubr.bf16.mxu0 0
        %353 = vmatmul.mubr.bf16.gmra.mxu0 %v257
        %v354 = vpop.f32.mrf.mxu0
        %v355 = vadd.f32 0.0, %v354
        %v356 = vpop.f32.mrf.mxu0
        %v357 = vpop.f32.mrf.mxu0
        %v358 = vadd.f32 0.0, %v357
        %v359 = vpop.f32.mrf.mxu0
        %360 = vdwg.mxu0
        %v361 = vlaneseq
        %v362 = vand.u32 %v361, 127
        %v363 = vadd.s32 %v362, 128
        %v364 = vadd.s32 %v362, 256
        %vm365 = vcmp.lt.s32.totalorder %v362, 0
        %v366 = vsub.s32 0, %v362
        %v367 = vsel %vm365, %v366, %v362
        %v368 = vmul.u32.u64.compose %v367, 4042322161
        %v369 = vextract.low.u32 %v368
        %v370 = vextract.high.u32 %v368
        %v371 = vshrl.u32 %v370, 4
        %v372 = vmul.u32 %v371, 17
        %v373 = vsub.s32 %v367, %v372
        %v374 = vsub.s32 0, %v373
        %v375 = vsel %vm365, %v374, %v373
        %vm376 = vcmp.lt.s32.totalorder %v363, 0
        %v377 = vsub.s32 0, %v363
        %v378 = vsel %vm376, %v377, %v363
        %v379 = vmul.u32.u64.compose %v378, 4042322161
        %v380 = vextract.low.u32 %v379
        %v381 = vextract.high.u32 %v379
        %v382 = vshrl.u32 %v381, 4
        %v383 = vmul.u32 %v382, 17
        %v384 = vsub.s32 %v378, %v383
        %v385 = vsub.s32 0, %v384
        %v386 = vsel %vm376, %v385, %v384
        %vm387 = vcmp.lt.s32.totalorder %v364, 0
        %v388 = vsub.s32 0, %v364
        %v389 = vsel %vm387, %v388, %v364
        %v390 = vmul.u32.u64.compose %v389, 4042322161
        %v391 = vextract.low.u32 %v390
        %v392 = vextract.high.u32 %v390
        %v393 = vshrl.u32 %v392, 4
        %v394 = vmul.u32 %v393, 17
        %v395 = vsub.s32 %v389, %v394
        %v396 = vsub.s32 0, %v395
        %v397 = vsel %vm387, %v396, %v395
        %vm398 = vcmp.ne.s32.totalorder %v375, 0
        %vm399 = vcmp.ne.s32.totalorder %v386, 0
        %vm400 = vcmp.ne.s32.totalorder %v397, 0
        %vm401 = vcmp.lt.s32.totalorder %v375, 0
        %vm402 = vcmp.lt.s32.totalorder %v386, 0
        %vm403 = vcmp.lt.s32.totalorder %v397, 0
        %vm404 = vmand %vm401, %vm398
        %vm405 = vmand %vm402, %vm399
        %vm406 = vmand %vm403, %vm400
        %v407 = vadd.s32 %v375, 17
        %v408 = vadd.s32 %v386, 17
        %v409 = vadd.s32 %v397, 17
        %v410 = vsel %vm404, %v407, %v375
        %v411 = vsel %vm405, %v408, %v386
        %v412 = vsel %vm406, %v409, %v397
        %vm413 = vcmp.lt.s32.totalorder %v410, 16
        %vm414 = vcmp.lt.s32.totalorder %v411, 16
        %vm415 = vcmp.lt.s32.totalorder %v412, 16
        %v416 = vsel %vm413, 1, 0
        %v417 = vsel %vm414, 1, 0
        %v418 = vsel %vm415, 1, 0
        %vm419 = vcmp.eq.s32.totalorder %v416, 1
        %vm420 = vcmp.eq.s32.totalorder %v417, 1
        %vm421 = vcmp.eq.s32.totalorder %v418, 1
        %v422 = vsel %vm419, %v294, 0.0
        %v423 = vsel %vm420, %v296, 0.0
        %v424 = vsel %vm421, %v347, 0.0
        %v425 = vsel %vm419, %v298, 0.0
        %v426 = vsel %vm420, %v300, 0.0
        %v427 = vsel %vm421, %v350, 0.0
        %v428 = vsel %vm419, %v304, 0.0
        %v429 = vsel %vm420, %v306, 0.0
        %v430 = vsel %vm421, %v355, 0.0
        %v431 = vsel %vm419, %v308, 0.0
        %v432 = vsel %vm420, %v310, 0.0
        %v433 = vsel %vm421, %v358, 0.0
        %v434 = vadd.f32 %v422, %v423
        %vm435 = vcmask 130048
        %v436 = vsel %vm435, %v424, 0.0
        %v437 = vadd.f32 %v434, %v436
        %438 = vadd.xlane.f32.xlu0 %v437
        %v439 = vpop.xlane.xlu0 %438
        %v440 = vadd.f32 %v425, %v426
        %v441 = vsel %vm435, %v427, 0.0
        %v442 = vadd.f32 %v440, %v441
        %443 = vadd.xlane.f32.xlu0 %v442
        %v444 = vpop.xlane.xlu0 %443
        %v445 = vadd.f32 %v428, %v429
        %v446 = vsel %vm435, %v430, 0.0
        %v447 = vadd.f32 %v445, %v446
        %448 = vadd.xlane.f32.xlu0 %v447
        %v449 = vpop.xlane.xlu0 %448
        %v450 = vadd.f32 %v431, %v432
        %v451 = vsel %vm435, %v433, 0.0
        %v452 = vadd.f32 %v450, %v451
        %453 = vadd.xlane.f32.xlu0 %v452
        %v454 = vpop.xlane.xlu0 %453
        %v455 = vmul.f32 %v422, %v422
        %v456 = vmul.f32 %v423, %v423
        %v457 = vmul.f32 %v424, %v424
        %v458 = vmul.f32 %v425, %v425
        %v459 = vmul.f32 %v426, %v426
        %v460 = vmul.f32 %v427, %v427
        %v461 = vmul.f32 %v428, %v428
        %v462 = vmul.f32 %v429, %v429
        %v463 = vmul.f32 %v430, %v430
        %v464 = vmul.f32 %v431, %v431
        %v465 = vmul.f32 %v432, %v432
        %v466 = vmul.f32 %v433, %v433
        %v467 = vadd.f32 %v455, %v456
        %v468 = vsel %vm435, %v457, 0.0
        %v469 = vadd.f32 %v467, %v468
        %470 = vadd.xlane.f32.xlu0 %v469
        %v471 = vpop.xlane.xlu0 %470
        %v472 = vadd.f32 %v458, %v459
        %v473 = vsel %vm435, %v460, 0.0
        %v474 = vadd.f32 %v472, %v473
        %475 = vadd.xlane.f32.xlu0 %v474
        %v476 = vpop.xlane.xlu0 %475
        %v477 = vadd.f32 %v461, %v462
        %v478 = vsel %vm435, %v463, 0.0
        %v479 = vadd.f32 %v477, %v478
        %480 = vadd.xlane.f32.xlu0 %v479
        %v481 = vpop.xlane.xlu0 %480
        %v482 = vadd.f32 %v464, %v465
        %v483 = vsel %vm435, %v466, 0.0
        %v484 = vadd.f32 %v482, %v483
        %485 = vadd.xlane.f32.xlu0 %v484
        %v486 = vpop.xlane.xlu0 %485
        %v487 = vadd.f32 %v439, %v444
        %v488 = vadd.f32 %v471, %v476
        %v489 = vadd.f32 %v487, %v449
        %v490 = vadd.f32 %v488, %v481
        %v491 = vadd.f32 %v489, %v454
        %v492 = vadd.f32 %v490, %v486
        %v493 = vmul.f32 %v491, 0.0009765625
        %v494 = vmul.f32 %v492, 0.0009765625
        %v495 = vmul.f32 %v493, %v493
        %v496 = vsub.f32 %v494, %v495
        %v497 = vadd.f32 %v496, 1e-05
        %v498 = vrsqrt.pop %v497
        %v499 = vmul.f32 %v493, %v498
        %501 = vset.pattern.permute.xlu0 0
        %502 = vperm.xlu0 %501, %v498
        %v503 = vpop.permute.xlu0 %502
        %v505 = vmul.f32 %v294, %v503
        %v506 = vmul.f32 %v296, %v503
        %v507 = vmul.f32 %v347, %v503
        %v508 = vmul.f32 %v298, %v503
        %v509 = vmul.f32 %v300, %v503
        %v510 = vmul.f32 %v350, %v503
        %v511 = vmul.f32 %v304, %v503
        %v512 = vmul.f32 %v306, %v503
        %v513 = vmul.f32 %v355, %v503
        %v514 = vmul.f32 %v308, %v503
        %v515 = vmul.f32 %v310, %v503
        %v516 = vmul.f32 %v358, %v503
        %518 = vset.pattern.permute.xlu0 0
        %519 = vperm.xlu0 %518, %v499
        %v520 = vpop.permute.xlu0 %519
        %v522 = vsub.f32 %v505, %v520
        %v523 = vsub.f32 %v506, %v520
        %v524 = vsub.f32 %v507, %v520
        %v525 = vsub.f32 %v508, %v520
        %v526 = vsub.f32 %v509, %v520
        %v527 = vsub.f32 %v510, %v520
        %v528 = vsub.f32 %v511, %v520
        %v529 = vsub.f32 %v512, %v520
        %v530 = vsub.f32 %v513, %v520
        %v531 = vsub.f32 %v514, %v520
        %v532 = vsub.f32 %v515, %v520
        %v533 = vsub.f32 %v516, %v520
        %v534 = vmul.f32 %v522, 0.01
        %v535 = vmul.f32 %v523, 0.01
        %v536 = vmul.f32 %v524, 0.01
        %v537 = vmul.f32 %v525, 0.01
        %v538 = vmul.f32 %v526, 0.01
        %v539 = vmul.f32 %v527, 0.01
        %v540 = vmul.f32 %v528, 0.01
        %v541 = vmul.f32 %v529, 0.01
        %v542 = vmul.f32 %v530, 0.01
        %v543 = vmul.f32 %v531, 0.01
        %v544 = vmul.f32 %v532, 0.01
        %v545 = vmul.f32 %v533, 0.01
        %v546 = vmax.f32 %v522, %v534
        %v547 = vmax.f32 %v523, %v535
        %v548 = vmax.f32 %v524, %v536
        %v549 = vmax.f32 %v525, %v537
        %v550 = vmax.f32 %v526, %v538
        %v551 = vmax.f32 %v527, %v539
        %v552 = vmax.f32 %v528, %v540
        %v553 = vmax.f32 %v529, %v541
        %v554 = vmax.f32 %v530, %v542
        %v555 = vmax.f32 %v531, %v543
        %v556 = vmax.f32 %v532, %v544
        %v557 = vmax.f32 %v533, %v545
        %558 = vst [vmem:[%s174] sm:$0xff] %v546
        %559 = vst [vmem:[%s174 + $0x8] sm:$0xff] %v547
        %560 = vst.msk [vmem:[%s174 + $0x10] sm:$0xff] %vm435, %v548
        %561 = vst [vmem:[%s174 + $0x18] sm:$0xff] %v549
        %562 = vst [vmem:[%s174 + $0x20] sm:$0xff] %v550
        %563 = vst.msk [vmem:[%s174 + $0x28] sm:$0xff] %vm435, %v551
        %564 = vst [vmem:[%s174 + $0x30] sm:$0xff] %v552
        %565 = vst [vmem:[%s174 + $0x38] sm:$0xff] %v553
        %566 = vst.msk [vmem:[%s174 + $0x40] sm:$0xff] %vm435, %v554
        %567 = vst [vmem:[%s174 + $0x48] sm:$0xff] %v555
        %568 = vst [vmem:[%s174 + $0x50] sm:$0xff] %v556
        %569 = vst.msk [vmem:[%s174 + $0x58] sm:$0xff] %vm435, %v557
        %s570 = sand.u32 %s75, 1
        %s571 = scalar_lea.sflag [#allocation4], %s570
        %s572 = sand.u32 %s75, 1
        %s573 = smul.addr %s572, 96
        %s574 = scalar_lea.vmem [#allocation7], %s573
        // Predicated region
        $region37: #{tpu_custom_call.1} parent=27 // pred_check
          %p575 = pneg %p85
        $region38: #{tpu_custom_call.1} parent=27 // pred_check_branch
          %577 = sbr.rel (%p575) target = $region40
        $region39: #{tpu_custom_call.1} parent=27 // pred_region
          %s579 = ssub.s32 1536, 1536
          %580 = vsyncadd %s571, %s579
          %s581 = smul.addr %s20, 12
          %s582 = smul.addr %s581, 128
          %s583 = scalar_lea.hbm %s2, %s582
          %s584 = sshll.u32 %s574, 4
          %s585 = int_to_ptr.vmem [resolvable:$true] %s584
          %590 = dma.vmem_to_hbm [thread:$0]  %s585, 1536, %s583, %s571, 384, 384, 24
        $region40: #{tpu_custom_call.1} parent=27 // pred_fallthru
          _
      $region28: #{tpu_custom_call.1} parent=5 // pred_fallthru
        _
      %p591 = scmp.le.s32.totalorder 2, %s15
      // Predicated region
      $region41: #{tpu_custom_call.1} parent=5 // pred_check
        %p592 = pneg %p591
      $region42: #{tpu_custom_call.1} parent=5 // pred_check_branch
        %594 = sbr.rel (%p592) target = $region44
      $region43: #{tpu_custom_call.1} parent=5 // pred_region
        %s595 = ssub.s32 %s15, 2
        // Predicated region
        $region45: #{tpu_custom_call.1} parent=43 // pred_check
          %p596 = pneg %p91
        $region46: #{tpu_custom_call.1} parent=43 // pred_check_branch
          %598 = sbr.rel (%p596) target = $region48
        $region47: #{tpu_custom_call.1} parent=43 // pred_region
          %s599 = sand.u32 %s76, 1
          %s600 = scalar_lea.sflag [#allocation4], %s599
          %s601 = sand.u32 %s76, 1
          %s602 = smul.addr %s601, 96
          %s603 = scalar_lea.vmem [#allocation7], %s602
          %604 = dma.done %s600, 1536
        $region48: #{tpu_custom_call.1} parent=43 // pred_fallthru
          _
      $region44: #{tpu_custom_call.1} parent=5 // pred_fallthru
        _
    $region6: #{tpu_custom_call.1} parent=1 // loop_footer
      %s19 = sadd.s32 1, %s15
    $region7: #{tpu_custom_call.1} parent=1 // loop_footer_branch
      %14 = sbr.rel target = $region3
    $region8: #{tpu_custom_call.1} parent=1 // loop_exit
      _
    %605 = vsyncpa [#allocation3], 1
    %s606 = scalar_lea.sflag [#allocation3], 1
    %607 = vsyncpa %s606, 1
    %608 = vsyncpa [#allocation6], 1
    %609 = vsyncpa [#allocation4], 1
    %s610 = scalar_lea.sflag [#allocation4], 1
    %611 = vsyncpa %s610, 1

</llo_original>
